<compile_context>
chip_gen: v7x
topology: tpu7x:2x2x1
jax: 0.10.0
libtpu: 0.0.40
codegen_flags: <defaults>
</compile_context>

<pallas_src>
import math

import jax
import jax.numpy as jnp
from jax import lax
from jax.experimental import pallas as pl
from jax.experimental.pallas import tpu as pltpu

NEG_INF = -1.0e30  # large finite mask value (avoids inf/NaN in the online softmax)


def _pick_tile(dim, target):
    """Largest of (target, dim) that satisfies the TPU block constraint:
    either the tile divides the dim, or it is the full dim."""
    t = min(dim, target)
    return t if dim % t == 0 else dim


# ------------------------------ linear kernel -------------------------------

def _linear_kernel(x_ref, w_ref, o_ref, acc_ref):
    # (tm, tk) @ (tk, tn) accumulated in f32 VMEM scratch over the K grid axis.
    @pl.when(pl.program_id(2) == 0)
    def _init():
        acc_ref[...] = jnp.zeros_like(acc_ref)

    acc_ref[...] += jnp.dot(x_ref[...], w_ref[...],
                            preferred_element_type=jnp.float32)

    @pl.when(pl.program_id(2) == pl.num_programs(2) - 1)
    def _store():
        o_ref[...] = acc_ref[...].astype(o_ref.dtype)


def linear(x, w, *, tm_target=256, tn_target=256, tk_target=512):
    M, K = x.shape
    K2, N = w.shape
    assert K == K2
    tm = _pick_tile(M, tm_target)
    tn = _pick_tile(N, tn_target)
    tk = _pick_tile(K, tk_target)
    return pl.pallas_call(
        _linear_kernel,
        out_shape=jax.ShapeDtypeStruct((M, N), x.dtype),
        grid_spec=pltpu.PrefetchScalarGridSpec(
            num_scalar_prefetch=0,
            grid=(M // tm, N // tn, K // tk),
            in_specs=[
                pl.BlockSpec((tm, tk), lambda i, j, k: (i, k)),
                pl.BlockSpec((tk, tn), lambda i, j, k: (k, j)),
            ],
            out_specs=pl.BlockSpec((tm, tn), lambda i, j, k: (i, j)),
            scratch_shapes=[pltpu.VMEM((tm, tn), jnp.float32)],
        ),
        compiler_params=pltpu.CompilerParams(
            dimension_semantics=("parallel", "parallel", "arbitrary"),
            vmem_limit_bytes=48 * 1024 * 1024,
        ),
    )(x, w)


# ---------------------------- attention kernel -------------------------------

def _rotate_half_positions(x):
    """concat([x[..., half:], x[..., :half]]).  The sign of RoPE's rotate_half
    is folded into the (pre-signed) sin table by the caller."""
    d = x.shape[-1]
    half = d // 2
    if d % 128 == 0:
        # Lane-width multiple: XLU rotate (free slot) instead of a lane concat.
        return pltpu.roll(x, shift=half, axis=-1)
    return jnp.concatenate([x[..., half:], x[..., :half]], axis=-1)


def _flash_attn_kernel(q_ref, k_ref, v_ref, cos_q_ref, sin_q_ref,
                       cos_k_ref, sin_k_ref, o_ref,
                       m_ref, l_ref, acc_ref, qrot_ref):
    qi = pl.program_id(2)
    ki = pl.program_id(3)
    n_kv_tiles = pl.num_programs(3)

    g, tq, d = q_ref.shape[1], q_ref.shape[2], q_ref.shape[3]   # heads per kv group
    tkv = k_ref.shape[2]
    rows = g * tq

    @pl.when(ki == 0)
    def _init():
        m_ref[...] = jnp.full_like(m_ref, NEG_INF)
        l_ref[...] = jnp.zeros_like(l_ref)
        acc_ref[...] = jnp.zeros_like(acc_ref)
        # RoPE(q) once per (batch, kv-head, q-tile); reused for every kv tile.
        q = q_ref[0].astype(jnp.float32)          # (g, tq, d)
        cq = cos_q_ref[...]                       # (tq, d), pre-scaled by 1/sqrt(d)
        sq = sin_q_ref[...]                       # (tq, d), sign-folded + pre-scaled
        q_rot = q * cq[None] + _rotate_half_positions(q) * sq[None]
        qrot_ref[...] = q_rot.reshape(rows, d).astype(qrot_ref.dtype)

    q_start = qi * tq
    k_start = ki * tkv
    # Causal tile classification (scalar, on the grid indices):
    #   contributes:    the kv tile has at least one visible key for this q tile
    #   fully_visible:  every key of the tile is visible to every query row
    contributes = k_start <= q_start + (tq - 1)
    fully_visible = k_start + (tkv - 1) <= q_start

    def _block(apply_mask):
        # RoPE(k) for this kv tile (streamed; small vs. the two matmuls).
        k = k_ref[0, 0].astype(jnp.float32)       # (tkv, d)
        v = v_ref[0, 0]                           # (tkv, d), native dtype
        ck = cos_k_ref[...]                       # (tkv, d)
        sk = sin_k_ref[...]                       # (tkv, d), sign-folded
        k_rot = k * ck + _rotate_half_positions(k) * sk
        k2 = k_rot.astype(k_ref.dtype)            # MXU operand in input dtype

        q2 = qrot_ref[...]                        # (rows, d), cached roped q
        s = jnp.dot(q2, k2.T, preferred_element_type=jnp.float32)   # (rows, tkv) f32

        if apply_mask:
            # In-kernel causal mask — only on tiles straddling the diagonal.
            q_pos = (lax.broadcasted_iota(jnp.int32, (g, tq, tkv), 1)
                     .reshape(rows, tkv) + q_start)
            k_pos = lax.broadcasted_iota(jnp.int32, (rows, tkv), 1) + k_start
            s = jnp.where(k_pos <= q_pos, s, NEG_INF)

        # Online (flash) softmax update.
        m_prev = m_ref[...]
        m_new = jnp.maximum(m_prev, jnp.max(s, axis=-1, keepdims=True))
        alpha = jnp.exp(m_prev - m_new)
        p = jnp.exp(s - m_new)
        l_ref[...] = alpha * l_ref[...] + jnp.sum(p, axis=-1, keepdims=True)
        acc_ref[...] = alpha * acc_ref[...] + jnp.dot(
            p.astype(v.dtype), v, preferred_element_type=jnp.float32)
        m_ref[...] = m_new

    @pl.when(jnp.logical_and(contributes, jnp.logical_not(fully_visible)))
    def _diagonal_tile():
        _block(apply_mask=True)

    @pl.when(fully_visible)
    def _interior_tile():
        _block(apply_mask=False)

    @pl.when(ki == n_kv_tiles - 1)
    def _finalize():
        inv_l = pl.reciprocal(l_ref[...], approx=True)   # EUP slot, ~free
        out = (acc_ref[...] * inv_l).reshape(g, tq, d)
        o_ref[0] = out.astype(o_ref.dtype)


def attention_core(q, k, v, cos_q, sin_q, cos_k, sin_k,
                   *, tq_target=256, tkv_target=512):
    """q: (B, NH, S, D) in canonical (kv-major) head order; k/v: (B, NKV, S, D)."""
    B, NH, S, D = q.shape
    NKV = k.shape[1]
    n_rep = NH // NKV
    tq = _pick_tile(S, tq_target)
    tkv = _pick_tile(S, tkv_target)
    rows = n_rep * tq

    return pl.pallas_call(
        _flash_attn_kernel,
        out_shape=jax.ShapeDtypeStruct((B, NH, S, D), q.dtype),
        grid_spec=pltpu.PrefetchScalarGridSpec(
            num_scalar_prefetch=0,
            grid=(B, NKV, S // tq, S // tkv),
            in_specs=[
                # all n_rep query heads that share kv head j are one block
                pl.BlockSpec((1, n_rep, tq, D), lambda b, j, qi, ki: (b, j, qi, 0)),
                pl.BlockSpec((1, 1, tkv, D), lambda b, j, qi, ki: (b, j, ki, 0)),
                pl.BlockSpec((1, 1, tkv, D), lambda b, j, qi, ki: (b, j, ki, 0)),
                pl.BlockSpec((tq, D), lambda b, j, qi, ki: (qi, 0)),   # cos_q
                pl.BlockSpec((tq, D), lambda b, j, qi, ki: (qi, 0)),   # sin_q
                pl.BlockSpec((tkv, D), lambda b, j, qi, ki: (ki, 0)),  # cos_k
                pl.BlockSpec((tkv, D), lambda b, j, qi, ki: (ki, 0)),  # sin_k
            ],
            out_specs=pl.BlockSpec((1, n_rep, tq, D),
                                   lambda b, j, qi, ki: (b, j, qi, 0)),
            scratch_shapes=[
                pltpu.VMEM((rows, 1), jnp.float32),   # running max
                pltpu.VMEM((rows, 1), jnp.float32),   # running sum
                pltpu.VMEM((rows, D), jnp.float32),   # output accumulator
                pltpu.VMEM((rows, D), q.dtype),       # cached roped q tile
            ],
        ),
        compiler_params=pltpu.CompilerParams(
            dimension_semantics=("parallel", "parallel", "parallel", "arbitrary"),
            vmem_limit_bytes=48 * 1024 * 1024,
        ),
    )(q, k, v, cos_q, sin_q, cos_k, sin_k)


# --------------------------- module forward (glue) --------------------------

def my_llama_attention_forward(params, hidden_states, position_ids,
                               num_heads, num_kv_heads, rope_theta, gqa_order):
    B, S, H = hidden_states.shape
    D = H // num_heads
    NKV = num_kv_heads
    n_rep = num_heads // NKV

    # Canonicalize GQA head ordering (heads sharing a kv head become contiguous)
    # by permuting wq columns / wo rows — a one-time weight shuffle, zero cost
    # in the hot path (replaces repeat_kv / my_repeat_kv materialization).
    wq, wk, wv, wo = params["wq"], params["wk"], params["wv"], params["wo"]
    if gqa_order == 1 and n_rep > 1:
        # my_repeat_kv: q head h uses kv head (h % NKV) -> reorder to kv-major.
        perm = jnp.arange(num_heads, dtype=jnp.int32).reshape(n_rep, NKV).T.reshape(-1)
        cols = (perm[:, None] * D + jnp.arange(D, dtype=jnp.int32)[None, :]).reshape(-1)
        wq = wq[:, cols]
        wo = wo[cols, :]
    # gqa_order == 0 (repeat_kv): q head h uses kv head (h // n_rep) — already canonical.

    # Fused QKV projection: activations are read from HBM once.
    x2d = hidden_states.reshape(B * S, H)
    w_qkv = jnp.concatenate([wq, wk, wv], axis=1)
    qkv = linear(x2d, w_qkv)
    q2d = qkv[:, :H]
    k2d = qkv[:, H:H + NKV * D]
    v2d = qkv[:, H + NKV * D:]

    # TODO(synk): for production shapes (head_dim a multiple of 128) the
    # attention BlockSpecs can index heads directly in the (B, S, H) layout and
    # these XLA transposes disappear.
    q = q2d.reshape(B, S, num_heads, D).transpose(0, 2, 1, 3)
    k = k2d.reshape(B, S, NKV, D).transpose(0, 2, 1, 3)
    v = v2d.reshape(B, S, NKV, D).transpose(0, 2, 1, 3)

    # RoPE tables (LlamaRotaryEmbedding), tiny and computed once per call.
    inv_freq = 1.0 / (rope_theta ** (jnp.arange(0, D, 2, dtype=jnp.float32) / D))
    freqs = position_ids.astype(jnp.float32)[:, None] * inv_freq[None, :]   # (S, D/2)
    emb = jnp.concatenate([freqs, freqs], axis=-1)                          # (S, D)
    cos = jnp.cos(emb)
    sin = jnp.sin(emb)
    half = D // 2
    sign = jnp.concatenate([-jnp.ones((half,), jnp.float32),
                            jnp.ones((half,), jnp.float32)])
    sin_signed = sin * sign[None, :]          # fold rotate_half's sign into sin
    scale = 1.0 / math.sqrt(D)
    cos_q, sin_q = cos * scale, sin_signed * scale   # fold 1/sqrt(D) into q's RoPE
    cos_k, sin_k = cos, sin_signed

    attn = attention_core(q, k, v, cos_q, sin_q, cos_k, sin_k)   # (B, NH, S, D)
    attn2d = attn.transpose(0, 2, 1, 3).reshape(B * S, H)
    out = linear(attn2d, wo).reshape(B, S, H)
    return out


# --------------------------- pure-JAX reference -----------------------------

def reference_forward(params, x, mask, pos, num_heads, num_kv, theta, gqa_order):
    B, S, H = x.shape
    D = H // num_heads
    q = (x.reshape(B * S, H) @ params["wq"]).reshape(B, S, num_heads, D).transpose(0, 2, 1, 3)
    k = (x.reshape(B * S, H) @ params["wk"]).reshape(B, S, num_kv, D).transpose(0, 2, 1, 3)
    v = (x.reshape(B * S, H) @ params["wv"]).reshape(B, S, num_kv, D).transpose(0, 2, 1, 3)

    inv_freq = 1.0 / (theta ** (jnp.arange(0, D, 2, dtype=jnp.float32) / D))
    freqs = pos.astype(jnp.float32)[:, None] * inv_freq[None, :]
    emb = jnp.concatenate([freqs, freqs], axis=-1)
    cos = jnp.cos(emb)[None, None]
    sin = jnp.sin(emb)[None, None]

    def rot_half(t):
        return jnp.concatenate([-t[..., D // 2:], t[..., :D // 2]], axis=-1)

    q = q * cos + rot_half(q) * sin
    k = k * cos + rot_half(k) * sin

    n_rep = num_heads // num_kv
    if gqa_order == 1:
        k = jnp.tile(k, (1, n_rep, 1, 1))     # my_repeat_kv ordering
        v = jnp.tile(v, (1, n_rep, 1, 1))
    else:
        k = jnp.repeat(k, n_rep, axis=1)      # repeat_kv ordering
        v = jnp.repeat(v, n_rep, axis=1)

    s = jnp.einsum('bhqd,bhkd->bhqk', q, k) / math.sqrt(D)
    s = s + mask
    p = jax.nn.softmax(s, axis=-1)
    o = jnp.einsum('bhqk,bhkd->bhqd', p, v)
    o = o.transpose(0, 2, 1, 3).reshape(B * S, H)
    return (o @ params["wo"]).reshape(B, S, H)


# --------------------------------- main -------------------------------------

if __name__ == "__main__":
    B, S = 2, 8
    hidden = 64
    num_heads = 4
    num_kv_heads = 2
    D = hidden // num_heads
    theta = 10000.0

    key = jax.random.PRNGKey(0)
    k1, k2, k3, k4, k5 = jax.random.split(key, 5)
    params = {
        "wq": 0.05 * jax.random.normal(k1, (hidden, num_heads * D), jnp.float32),
        "wk": 0.05 * jax.random.normal(k2, (hidden, num_kv_heads * D), jnp.float32),
        "wv": 0.05 * jax.random.normal(k3, (hidden, num_kv_heads * D), jnp.float32),
        "wo": 0.05 * jax.random.normal(k4, (hidden, hidden), jnp.float32),
    }
    x = jax.random.normal(k5, (B, S, hidden), jnp.float32)
    pos = jnp.arange(S, dtype=jnp.int32)

    # Additive causal mask for the pure-JAX reference only; the Pallas kernel
    # generates its causal mask in-kernel (no S x S HBM traffic).
    neg = jnp.finfo(jnp.float32).min
    causal = jnp.where(jnp.tril(jnp.ones((S, S), dtype=bool)), 0.0, neg)
    mask = jnp.broadcast_to(causal[None, None], (B, 1, S, S)).astype(jnp.float32)

    for gqa_order in (0, 1):   # exercise both repeat_kv and my_repeat_kv orderings
        out = my_llama_attention_forward(
            params, x, pos, num_heads, num_kv_heads, theta, gqa_order)
        out = jax.block_until_ready(out)
        ref = reference_forward(
            params, x, mask, pos, num_heads, num_kv_heads, theta, gqa_order)
        assert out.shape == (B, S, hidden)
        # Tolerance loosened from 1e-5: approx reciprocal (EUP) + folding the
        # 1/sqrt(D) scale into q reassociates a few float ops.
        assert jnp.allclose(out, ref, atol=2e-3, rtol=2e-3), (
            f"gqa_order={gqa_order}: max abs err = {jnp.max(jnp.abs(out - ref))}")

    print("KERNEL_OK")
</pallas_src>

<mosaic_0001>
module attributes {stable_mosaic.version = 11 : i64} {
  func.func @_linear_kernel(%arg0: i32, %arg1: i32, %arg2: i32, %arg3: memref<16x64xf32, #tpu.memory_space<vmem>>, %arg4: memref<64x128xf32, #tpu.memory_space<vmem>>, %arg5: memref<16x128xf32, #tpu.memory_space<vmem>>, %arg6: memref<16x128xf32, #tpu.memory_space<vmem>>) attributes {dimension_semantics = [#tpu.dimension_semantics<parallel>, #tpu.dimension_semantics<parallel>, #tpu.dimension_semantics<arbitrary>], iteration_bounds = array<i64: 1, 1, 1>, scalar_prefetch = 0 : i64, scratch_operands = 1 : i64, tpu.core_type = #tpu.core_type<tc>, window_params = [{transform_indices = @transform_0, window_bounds = array<i64: 16, 64>}, {transform_indices = @transform_1, window_bounds = array<i64: 64, 128>}, {transform_indices = @transform_2, window_bounds = array<i64: 16, 128>}]} {
    %c0_i32 = arith.constant 0 : i32
    %0 = arith.cmpi eq, %arg2, %c0_i32 : i32
    %1 = arith.extui %0 : i1 to i32
    %c0_i32_0 = arith.constant 0 : i32
    %2 = arith.cmpi ne, %1, %c0_i32_0 : i32
    scf.if %2 {
      %cst_10 = arith.constant 0.000000e+00 : f32
      %12 = vector.broadcast %cst_10 : f32 to vector<16x128xf32>
      %c0_11 = arith.constant 0 : index
      %c0_12 = arith.constant 0 : index
      %13 = vector.load %arg6[%c0_11, %c0_12] : memref<16x128xf32, #tpu.memory_space<vmem>>, vector<16x128xf32>
      tpu.vector_store %arg6[%c0_11, %c0_12], %12 {strides = array<i32>} : memref<16x128xf32, #tpu.memory_space<vmem>>, vector<16x128xf32>,
    } else {
    }
    %c0 = arith.constant 0 : index
    %c0_1 = arith.constant 0 : index
    %3 = vector.load %arg6[%c0, %c0_1] : memref<16x128xf32, #tpu.memory_space<vmem>>, vector<16x128xf32>
    %c0_2 = arith.constant 0 : index
    %c0_3 = arith.constant 0 : index
    %4 = vector.load %arg3[%c0_2, %c0_3] : memref<16x64xf32, #tpu.memory_space<vmem>>, vector<16x64xf32>
    %c0_4 = arith.constant 0 : index
    %c0_5 = arith.constant 0 : index
    %5 = vector.load %arg4[%c0_4, %c0_5] : memref<64x128xf32, #tpu.memory_space<vmem>>, vector<64x128xf32>
    %cst = arith.constant dense<0.000000e+00> : vector<16x128xf32>
    %6 = tpu.matmul %4, %5, %cst {dimension_numbers = #tpu.dot_dimension_numbers<[1], [0], [0], [1], [0, 0, 1, 1], [], []>} : vector<16x64xf32>, vector<64x128xf32>, vector<16x128xf32> -> vector<16x128xf32>
    %7 = arith.addf %3, %6 : vector<16x128xf32>
    %c0_6 = arith.constant 0 : index
    %c0_7 = arith.constant 0 : index
    %8 = vector.load %arg6[%c0_6, %c0_7] : memref<16x128xf32, #tpu.memory_space<vmem>>, vector<16x128xf32>
    tpu.vector_store %arg6[%c0_6, %c0_7], %7 {strides = array<i32>} : memref<16x128xf32, #tpu.memory_space<vmem>>, vector<16x128xf32>,
    %c0_i32_8 = arith.constant 0 : i32
    %9 = arith.cmpi eq, %arg2, %c0_i32_8 : i32
    %10 = arith.extui %9 : i1 to i32
    %c0_i32_9 = arith.constant 0 : i32
    %11 = arith.cmpi ne, %10, %c0_i32_9 : i32
    scf.if %11 {
      %c0_10 = arith.constant 0 : index
      %c0_11 = arith.constant 0 : index
      %12 = vector.load %arg6[%c0_10, %c0_11] : memref<16x128xf32, #tpu.memory_space<vmem>>, vector<16x128xf32>
      %c0_12 = arith.constant 0 : index
      %c0_13 = arith.constant 0 : index
      %13 = vector.load %arg5[%c0_12, %c0_13] : memref<16x128xf32, #tpu.memory_space<vmem>>, vector<16x128xf32>
      tpu.vector_store %arg5[%c0_12, %c0_13], %12 {strides = array<i32>} : memref<16x128xf32, #tpu.memory_space<vmem>>, vector<16x128xf32>,
    } else {
    }
    return
  }
  func.func @transform_0(%arg0: i32, %arg1: i32, %arg2: i32) -> (i32, i32) {
    %c0_i32 = arith.constant 0 : i32
    return %arg0, %arg2 : i32, i32
  }
  func.func @transform_1(%arg0: i32, %arg1: i32, %arg2: i32) -> (i32, i32) {
    %c0_i32 = arith.constant 0 : i32
    return %arg2, %arg1 : i32, i32
  }
  func.func @transform_2(%arg0: i32, %arg1: i32, %arg2: i32) -> (i32, i32) {
    %c0_i32 = arith.constant 0 : i32
    return %arg0, %arg1 : i32, i32
  }
}

</mosaic_0001>

<llo_original>
// kernel: tpu_custom_call.1
$region0: #{tpu_custom_call.1}
  #allocation0 [shape = 'u32[]', space=smem, size = 0x4, offset = 0x4, fixed_abs, tag = 'smem constant byte address 0x4 - core index']
  #allocation1 [shape = 'u32[144,128]{1,0:T(1,128)}', space=vmem, size = 0x12000, scoped, tag = 'internal scratch']
  #allocation2 [shape = 'f32[16,128]{1,0:T(8,128)}', space=vmem, size = 0x2000, scoped, tag = 'scratch operand']
  %s0 = inlined_call_operand.hbm [shape: f32[16,64], index: 0, kind: input, shape index: {}]
  %s1 = inlined_call_operand.hbm [shape: f32[64,128], index: 1, kind: input, shape index: {}]
  %s2 = inlined_call_operand.hbm [shape: f32[16,128], index: 2, kind: output, shape index: {}]
  %s3 = sld [smem:[#allocation0]]
  $region34: #{tpu_custom_call.1} parent=0
    _
  %s5 = ssub.s32 1, %s3
  %s6 = scalar_select 0, %s5, %s3
  $region1: #{tpu_custom_call.1} parent=0
    #allocation3 [shape = 'u8[8192]{0}', space=vmem, size = 0x2000, scoped, tag = 'input window, operand 0, single buffered']
    #allocation4 [shape = 's32[1]{0}', space=sflag, size = 0x4, scoped, tag = 'scoped memory for tpu_custom_call.1']
    #allocation5 [shape = 's32[1]{0}', space=sflag, size = 0x4, scoped, tag = 'scoped memory for tpu_custom_call.1']
    #allocation6 [shape = 'u8[32768]{0}', space=vmem, size = 0x8000, scoped, tag = 'input window, operand 1, single buffered']
    #allocation7 [shape = 's32[1]{0}', space=sflag, size = 0x4, scoped, tag = 'scoped memory for tpu_custom_call.1']
    #allocation8 [shape = 'u8[8192]{0}', space=vmem, size = 0x2000, scoped, tag = 'output window, operand 0, single buffered']
    %7 = vsyncpa [#allocation4], 0
    %8 = vsyncpa [#allocation7], 0
    %9 = vsyncpa [#allocation5], 0
    // Predicated region
    $region2: #{tpu_custom_call.1} parent=1 // pred_check
      _
    $region3: #{tpu_custom_call.1} parent=1 // pred_check_branch
      %11 = sbr.rel (0) target = $region5
    $region4: #{tpu_custom_call.1} parent=1 // pred_region
      %s13 = ssub.s32 256, 256
      %14 = vsyncadd [#allocation4], %s13
      %s15 = sshll.u32 [#allocation3], 4
      %s16 = int_to_ptr.vmem [resolvable:$true] %s15
      %21 = dma.hbm_to_vmem [thread:$0]  %s0, 256, %s16, [#allocation4], 128, 128, 8
    $region5: #{tpu_custom_call.1} parent=1 // pred_fallthru
      _
    // Predicated region
    $region6: #{tpu_custom_call.1} parent=1 // pred_check
      _
    $region7: #{tpu_custom_call.1} parent=1 // pred_check_branch
      %23 = sbr.rel (0) target = $region9
    $region8: #{tpu_custom_call.1} parent=1 // pred_region
      %s25 = ssub.s32 1024, 1024
      %26 = vsyncadd [#allocation7], %s25
      %s27 = sshll.u32 [#allocation6], 4
      %s28 = int_to_ptr.vmem [resolvable:$true] %s27
      %33 = dma.hbm_to_vmem [thread:$0]  %s1, 1024, %s28, [#allocation7], 128, 128, 8
    $region9: #{tpu_custom_call.1} parent=1 // pred_fallthru
      _
    // Predicated region
    $region10: #{tpu_custom_call.1} parent=1 // pred_check
      _
    $region11: #{tpu_custom_call.1} parent=1 // pred_check_branch
      %35 = sbr.rel (0) target = $region13
    $region12: #{tpu_custom_call.1} parent=1 // pred_region
      %36 = dma.done [#allocation4], 256
    $region13: #{tpu_custom_call.1} parent=1 // pred_fallthru
      _
    // Predicated region
    $region14: #{tpu_custom_call.1} parent=1 // pred_check
      _
    $region15: #{tpu_custom_call.1} parent=1 // pred_check_branch
      %38 = sbr.rel (0) target = $region17
    $region16: #{tpu_custom_call.1} parent=1 // pred_region
      %39 = dma.done [#allocation7], 1024
    $region17: #{tpu_custom_call.1} parent=1 // pred_fallthru
      _
    %p40 = scmp.eq.s32.totalorder 0, 0
    // Predicated region
    $region18: #{tpu_custom_call.1} parent=1 // pred_check
      %p41 = pneg %p40
    $region19: #{tpu_custom_call.1} parent=1 // pred_check_branch
      %43 = sbr.rel (%p41) target = $region21
    $region20: #{tpu_custom_call.1} parent=1 // pred_region
      %44 = vst [vmem:[#allocation2] sm:$0xff] 0.0
      %45 = vst [vmem:[#allocation2 + $0x8] sm:$0xff] 0.0
    $region21: #{tpu_custom_call.1} parent=1 // pred_fallthru
      _
    %v46 = vld [vmem:[#allocation2] sm:$0xff]
    %v47 = vld [vmem:[#allocation2 + $0x8] sm:$0xff]
    %v48 = vld [vmem:[#allocation3] sm:$0xff]
    %v49 = vld [vmem:[#allocation3 + $0x8] sm:$0xff]
    %v50 = vld [vmem:[#allocation6] sm:$0xff]
    %v51 = vld [vmem:[#allocation6 + $0x8] sm:$0xff]
    %v52 = vld [vmem:[#allocation6 + $0x10] sm:$0xff]
    %v53 = vld [vmem:[#allocation6 + $0x18] sm:$0xff]
    %v54 = vld [vmem:[#allocation6 + $0x20] sm:$0xff]
    %v55 = vld [vmem:[#allocation6 + $0x28] sm:$0xff]
    %v56 = vld [vmem:[#allocation6 + $0x30] sm:$0xff]
    %v57 = vld [vmem:[#allocation6 + $0x38] sm:$0xff]
    %vm58 = vcmask 523264
    %v60 = vsel %vm58, %v48, 0
    %v63 = vsel %vm58, %v49, 0
    %65 = vmatprep.subr.mxu0 0.0
    %66 = vmatpush1.msra.mxu0 %v50
    %67 = vmatprep.subr.mxu0 0.0
    %68 = vmatpush1.msra.mxu0 %v51
    %69 = vmatprep.subr.mxu0 0.0
    %70 = vmatpush1.msra.mxu0 %v52
    %71 = vmatprep.subr.mxu0 0.0
    %72 = vmatpush1.msra.mxu0 %v53
    %73 = vmatprep.subr.mxu0 0.0
    %74 = vmatpush1.msra.mxu0 %v54
    %75 = vmatprep.subr.mxu0 0.0
    %76 = vmatpush1.msra.mxu0 %v55
    %77 = vmatprep.subr.mxu0 0.0
    %78 = vmatpush1.msra.mxu0 %v56
    %79 = vmatprep.subr.mxu0 0.0
    %80 = vmatpush1.msra.mxu0 %v57
    %81 = vmatprep.subr.mxu0 0.0
    %82 = vmatpush1.msra.mxu0 0.0
    %83 = vmatprep.subr.mxu0 0.0
    %84 = vmatpush1.msra.mxu0 0.0
    %85 = vmatprep.subr.mxu0 0.0
    %86 = vmatpush1.msra.mxu0 0.0
    %87 = vmatprep.subr.mxu0 0.0
    %88 = vmatpush1.msra.mxu0 0.0
    %89 = vmatprep.subr.mxu0 0.0
    %90 = vmatpush1.msra.mxu0 0.0
    %91 = vmatprep.subr.mxu0 0.0
    %92 = vmatpush1.msra.mxu0 0.0
    %93 = vmatprep.subr.mxu0 0.0
    %94 = vmatpush1.msra.mxu0 0.0
    %95 = vmatprep.subr.mxu0 0.0
    %96 = vmatpush1.msra.mxu0 0.0
    %97 = vmatprep.subr.mxu0 0.0
    %98 = vmatpush1.msra.mxu0 0.0
    %99 = vmatprep.subr.mxu0 0.0
    %100 = vmatpush1.msra.mxu0 0.0
    %101 = vmatprep.subr.mxu0 0.0
    %102 = vmatpush1.msra.mxu0 0.0
    %103 = vmatprep.subr.mxu0 0.0
    %104 = vmatpush1.msra.mxu0 0.0
    %105 = vmatprep.subr.mxu0 0.0
    %106 = vmatpush1.msra.mxu0 0.0
    %107 = vmatprep.subr.mxu0 0.0
    %108 = vmatpush1.msra.mxu0 0.0
    %109 = vmatprep.subr.mxu0 0.0
    %110 = vmatpush1.msra.mxu0 0.0
    %111 = vmatprep.subr.mxu0 0.0
    %112 = vmatpush1.msra.mxu0 0.0
    %113 = vmatprep.subr.mxu0 0.0
    %114 = vmatpush1.msra.mxu0 0.0
    %115 = vmatprep.subr.mxu0 0.0
    %116 = vmatpush1.msra.mxu0 0.0
    %117 = vmatprep.subr.mxu0 0.0
    %118 = vmatpush1.msra.mxu0 0.0
    %119 = vmatprep.subr.mxu0 0.0
    %120 = vmatpush1.msra.mxu0 0.0
    %121 = vmatprep.subr.mxu0 0.0
    %122 = vmatpush1.msra.mxu0 0.0
    %123 = vmatprep.subr.mxu0 0.0
    %124 = vmatpush1.msra.mxu0 0.0
    %125 = vmatprep.subr.mxu0 0.0
    %126 = vmatpush1.msra.mxu0 0.0
    %127 = vmatprep.subr.mxu0 0.0
    %128 = vmatpush1.msra.mxu0 0.0
    %129 = vmatprep.mubr.f32.mxu0 0.0
    %130 = vmatmul.mubr.f32.gmra.mrb[0].mxu0 %v60
    %v131 = vpop.f32.mrb[0].mxu0
    %v132 = vadd.f32 0.0, %v131
    %v133 = vpop.f32.mrb[0].mxu0
    %134 = vmatprep.mubr.f32.mxu0 0.0
    %135 = vmatmul.mubr.f32.gmra.mrb[0].mxu0 %v63
    %v136 = vpop.f32.mrb[0].mxu0
    %v137 = vadd.f32 0.0, %v136
    %v138 = vpop.f32.mrb[0].mxu0
    %139 = vdwg.mxu0
    %v140 = vadd.f32 %v46, %v132
    %v141 = vadd.f32 %v47, %v137
    %142 = vst [vmem:[#allocation2] sm:$0xff] %v140
    %143 = vst [vmem:[#allocation2 + $0x8] sm:$0xff] %v141
    // Predicated region
    $region22: #{tpu_custom_call.1} parent=1 // pred_check
      %p144 = pneg %p40
    $region23: #{tpu_custom_call.1} parent=1 // pred_check_branch
      %146 = sbr.rel (%p144) target = $region25
    $region24: #{tpu_custom_call.1} parent=1 // pred_region
      %v147 = vld [vmem:[#allocation2] sm:$0xff]
      %v148 = vld [vmem:[#allocation2 + $0x8] sm:$0xff]
      %149 = vst [vmem:[#allocation8] sm:$0xff] %v147
      %150 = vst [vmem:[#allocation8 + $0x8] sm:$0xff] %v148
    $region25: #{tpu_custom_call.1} parent=1 // pred_fallthru
      _
    // Predicated region
    $region26: #{tpu_custom_call.1} parent=1 // pred_check
      _
    $region27: #{tpu_custom_call.1} parent=1 // pred_check_branch
      %152 = sbr.rel (0) target = $region29
    $region28: #{tpu_custom_call.1} parent=1 // pred_region
      %s154 = ssub.s32 256, 256
      %155 = vsyncadd [#allocation5], %s154
      %s156 = sshll.u32 [#allocation8], 4
      %s157 = int_to_ptr.vmem [resolvable:$true] %s156
      %162 = dma.vmem_to_hbm [thread:$0]  %s157, 256, %s2, [#allocation5], 128, 128, 8
    $region29: #{tpu_custom_call.1} parent=1 // pred_fallthru
      _
    // Predicated region
    $region30: #{tpu_custom_call.1} parent=1 // pred_check
      _
    $region31: #{tpu_custom_call.1} parent=1 // pred_check_branch
      %164 = sbr.rel (0) target = $region33
    $region32: #{tpu_custom_call.1} parent=1 // pred_region
      %165 = dma.done [#allocation5], 256
    $region33: #{tpu_custom_call.1} parent=1 // pred_fallthru
      _
    %166 = vsyncpa [#allocation4], 1
    %167 = vsyncpa [#allocation7], 1
    %168 = vsyncpa [#allocation5], 1

</llo_original>
